<compile_context>
chip_gen: v5e
topology: v5e:2x2
jax: 0.10.0
libtpu: 0.0.40
codegen_flags: <defaults>
</compile_context>

<pallas_src>
import functools

import jax
import jax.numpy as jnp
from jax.experimental import pallas as pl
from jax.experimental.pallas import tpu as pltpu


def _round_up(x, m):
    return (x + m - 1) // m * m


# ---------------------------------------------------------------------------
# One-time feature / hardware detection (no per-call try/except).
# ---------------------------------------------------------------------------

_BUFFERED_SUPPORT = None


def _detect_buffered_support():
    """Check once whether pipeline_mode=pl.Buffered(1) lowers on this build."""
    if not hasattr(pl, "Buffered"):
        return False

    def k(x_ref, c_ref, o_ref):
        o_ref[...] = x_ref[...] + c_ref[...]

    try:
        x = jnp.zeros((8, 128), jnp.float32)
        c = jnp.ones((8, 128), jnp.float32)
        out = pl.pallas_call(
            k,
            out_shape=jax.ShapeDtypeStruct((8, 128), jnp.float32),
            grid=(1,),
            in_specs=[
                pl.BlockSpec((8, 128), lambda i: (0, 0)),
                pl.BlockSpec((8, 128), lambda i: (0, 0),
                             pipeline_mode=pl.Buffered(buffer_count=1)),
            ],
            out_specs=pl.BlockSpec((8, 128), lambda i: (0, 0)),
        )(x, c)
        jax.block_until_ready(out)
        return True
    except Exception:
        return False


def _buffered_supported():
    global _BUFFERED_SUPPORT
    if _BUFFERED_SUPPORT is None:
        _BUFFERED_SUPPORT = _detect_buffered_support()
    return _BUFFERED_SUPPORT


def _default_config():
    """(row_tile, vmem_limit_bytes) per TPU generation."""
    tm, vmem = 256, 48 * 1024 * 1024            # safe for v7x (64 MiB VMEM / TC)
    try:
        info = pltpu.get_tpu_info()
        cap = int(getattr(info, "vmem_capacity_bytes", 0) or 0)
        if cap >= 100 * 1024 * 1024:            # v5e / v6e: 128 MiB VMEM
            tm, vmem = 512, 96 * 1024 * 1024
    except Exception:
        pass
    return tm, vmem


def _choose_tile_m(M, tm, quantum=16):
    """Row tile: big, but keep >= 2 grid steps when possible (v7x has 2 TCs)."""
    mq = _round_up(max(M, 1), quantum)
    tm_eff = min(_round_up(tm, quantum), mq)
    if mq <= tm_eff and mq >= 2 * quantum:
        tm_eff = _round_up(mq // 2, quantum)
    return max(tm_eff, quantum)


# ---------------------------------------------------------------------------
# Kernel body
# ---------------------------------------------------------------------------

def _make_kernel(eps, n_valid, n_pad):
    masked = (n_valid != n_pad)
    inv_n = 1.0 / float(n_valid)

    def kernel(x_ref, w_ref, p_ref, res_ref, o_ref):
        # Dense: (tm, K) @ (K, n_pad) in bf16 on the MXU, f32 accumulation.
        h = jnp.dot(x_ref[...], w_ref[...], preferred_element_type=jnp.float32)

        p = p_ref[...]                                    # (4, n_pad) f32
        bias, gamma, beta, mask = p[0:1], p[1:2], p[2:3], p[3:4]

        # TODO(synk): dropout is identity at inference; training-mode dropout
        #             from the PyTorch module is not emitted.
        h = h + bias + res_ref[...].astype(jnp.float32)

        # Padded lanes of h are exactly zero (weight/bias/residual zero-padded),
        # so a full-width sum equals the sum over the valid hidden width.
        mean = jnp.sum(h, axis=-1, keepdims=True) * inv_n
        centered = h - mean
        if masked:
            centered = centered * mask                    # zero padded lanes
        var = jnp.sum(centered * centered, axis=-1, keepdims=True) * inv_n

        inv_std = jax.lax.rsqrt(var + eps)                # EUP slot, ~free
        y = centered * inv_std * gamma + beta
        o_ref[...] = y.astype(o_ref.dtype)

    return kernel


# ---------------------------------------------------------------------------
# Jitted per-call path
# ---------------------------------------------------------------------------

def _forward_impl(x, residual, weight_t, params, *, eps, n_valid, tm,
                  vmem_limit_bytes, use_buffered):
    M, K = x.shape
    Kw, n_pad = weight_t.shape
    assert Kw == K and residual.shape[0] == M
    out_dtype = residual.dtype

    tm_eff = _choose_tile_m(M, tm)
    m_pad = _round_up(M, tm_eff)

    x_b = x.astype(jnp.bfloat16)                 # bf16 MXU operands
    res = residual
    if res.shape[1] != n_pad:
        res = jnp.pad(res, ((0, 0), (0, n_pad - res.shape[1])))
    if m_pad != M:
        x_b = jnp.pad(x_b, ((0, m_pad - M), (0, 0)))
        res = jnp.pad(res, ((0, m_pad - M), (0, 0)))

    inv_kw = (dict(pipeline_mode=pl.Buffered(buffer_count=1))
              if use_buffered else {})

    grid = (m_pad // tm_eff,)
    kernel = _make_kernel(eps, n_valid, n_pad)

    out = pl.pallas_call(
        kernel,
        out_shape=jax.ShapeDtypeStruct((m_pad, n_pad), out_dtype),
        grid_spec=pl.GridSpec(
            grid=grid,
            in_specs=[
                pl.BlockSpec((tm_eff, K), lambda i: (i, 0)),            # activations
                pl.BlockSpec((K, n_pad), lambda i: (0, 0), **inv_kw),   # resident weight
                pl.BlockSpec((4, n_pad), lambda i: (0, 0), **inv_kw),   # bias/gamma/beta/mask
                pl.BlockSpec((tm_eff, n_pad), lambda i: (i, 0)),        # residual
            ],
            out_specs=pl.BlockSpec((tm_eff, n_pad), lambda i: (i, 0)),
        ),
        compiler_params=pltpu.CompilerParams(
            dimension_semantics=("parallel",),
            vmem_limit_bytes=vmem_limit_bytes),
    )(x_b, weight_t, params, res)

    return out[:M, :n_valid]


_forward = jax.jit(
    _forward_impl,
    static_argnames=("eps", "n_valid", "tm", "vmem_limit_bytes", "use_buffered"))


# ---------------------------------------------------------------------------
# Parameter preparation (done once per layer) + public API
# ---------------------------------------------------------------------------

def prepare_params(weight, bias, gamma, beta, *, compute_dtype=jnp.bfloat16):
    """Transpose/pad/cast the Linear weight; pack bias/gamma/beta/mask."""
    N, K = weight.shape
    n_pad = _round_up(N, 128)

    w_t = weight.T.astype(compute_dtype)                  # (K, N)
    if n_pad != N:
        w_t = jnp.pad(w_t, ((0, 0), (0, n_pad - N)))

    def padr(v):
        v = v.astype(jnp.float32).reshape(-1)
        return jnp.pad(v, (0, n_pad - N)) if n_pad != N else v

    mask = (jnp.arange(n_pad) < N).astype(jnp.float32)
    params = jnp.stack([padr(bias), padr(gamma), padr(beta), mask], axis=0)
    return w_t, params


def make_memoria_bert_output(weight, bias, gamma, beta, *, eps=1e-12,
                             tm=None, vmem_limit_bytes=None):
    """Prepare parameters once; return a callable `forward(hidden, residual)`."""
    N = weight.shape[0]
    weight_t, params = prepare_params(weight, bias, gamma, beta)
    dtm, dvmem = _default_config()
    tm = dtm if tm is None else tm
    vmem_limit_bytes = dvmem if vmem_limit_bytes is None else vmem_limit_bytes
    use_buffered = _buffered_supported()

    def apply(hidden_states, input_tensor):
        lead = hidden_states.shape[:-1]
        x2 = hidden_states.reshape(-1, hidden_states.shape[-1])
        r2 = input_tensor.reshape(-1, input_tensor.shape[-1])
        out = _forward(x2, r2, weight_t, params,
                       eps=eps, n_valid=N, tm=tm,
                       vmem_limit_bytes=vmem_limit_bytes,
                       use_buffered=use_buffered)
        return out.reshape(*lead, N)

    return apply


def memoria_bert_output(hidden_states, input_tensor, weight, bias, gamma, beta,
                        *, eps=1e-12, **kw):
    """Convenience one-shot wrapper (prefer make_memoria_bert_output in loops)."""
    fwd = make_memoria_bert_output(weight, bias, gamma, beta, eps=eps, **kw)
    return fwd(hidden_states, input_tensor)


# ---------------------------------------------------------------------------
# Reference + test harness
# ---------------------------------------------------------------------------

def _reference(hs, res, w, b, gamma, beta, eps, mm_dtype):
    h = jnp.dot(hs.astype(mm_dtype), w.T.astype(mm_dtype),
                preferred_element_type=jnp.float32)
    h = h + b + res
    mean = jnp.mean(h, axis=-1, keepdims=True)
    var = jnp.mean((h - mean) ** 2, axis=-1, keepdims=True)
    return (h - mean) * jax.lax.rsqrt(var + eps) * gamma + beta


def _make_inputs(key, batch, seq, hidden, inter):
    k1, k2, k3, k4, k5, k6 = jax.random.split(key, 6)
    hs = jax.random.normal(k1, (batch, seq, inter), jnp.float32)
    res = jax.random.normal(k2, (batch, seq, hidden), jnp.float32)
    bound = 1.0 / (inter ** 0.5)
    w = jax.random.uniform(k3, (hidden, inter), jnp.float32, -bound, bound)
    b = jax.random.uniform(k4, (hidden,), jnp.float32, -bound, bound)
    gamma = jnp.ones((hidden,), jnp.float32) + 0.01 * jax.random.normal(k5, (hidden,))
    beta = 0.01 * jax.random.normal(k6, (hidden,))
    return hs, res, w, b, gamma, beta


if __name__ == "__main__":
    eps = 1e-12
    key = jax.random.PRNGKey(0)
    k1, k2 = jax.random.split(key)

    # Test 1: batch=2, seq=8, hidden=32, intermediate=128.
    # Exercises the lane-padding + masked-variance path.
    batch, seq, hidden, inter = 2, 8, 32, 128
    hs, res, w, b, g, bt = _make_inputs(k1, batch, seq, hidden, inter)
    fwd = make_memoria_bert_output(w, b, g, bt, eps=eps)
    out = jax.block_until_ready(fwd(hs, res))
    assert out.shape == (batch, seq, hidden)
    ref16 = _reference(hs, res, w, b, g, bt, eps, jnp.bfloat16)
    ref32 = _reference(hs, res, w, b, g, bt, eps, jnp.float32)
    assert jnp.allclose(out, ref16, atol=5e-3, rtol=5e-3), "mismatch vs bf16 ref (test 1)"
    assert jnp.allclose(out, ref32, atol=5e-2, rtol=5e-2), "mismatch vs f32 ref (test 1)"

    # Test 2: lane-aligned hidden (128), multi-step parallel row grid,
    # unmasked path, resident bf16 weight.
    batch, seq, hidden, inter = 2, 32, 128, 512
    hs2, res2, w2, b2, g2, bt2 = _make_inputs(k2, batch, seq, hidden, inter)
    fwd2 = make_memoria_bert_output(w2, b2, g2, bt2, eps=eps, tm=32)
    out2 = jax.block_until_ready(fwd2(hs2, res2))
    assert out2.shape == (batch, seq, hidden)
    ref16_2 = _reference(hs2, res2, w2, b2, g2, bt2, eps, jnp.bfloat16)
    ref32_2 = _reference(hs2, res2, w2, b2, g2, bt2, eps, jnp.float32)
    assert jnp.allclose(out2, ref16_2, atol=5e-3, rtol=5e-3), "mismatch vs bf16 ref (test 2)"
    assert jnp.allclose(out2, ref32_2, atol=5e-2, rtol=5e-2), "mismatch vs f32 ref (test 2)"

    print("KERNEL_OK")
</pallas_src>

<mosaic_0001>
module attributes {stable_mosaic.version = 11 : i64} {
  func.func @k(%arg0: i32, %arg1: memref<8x128xf32, #tpu.memory_space<vmem>>, %arg2: memref<8x128xf32, #tpu.memory_space<vmem>>, %arg3: memref<8x128xf32, #tpu.memory_space<vmem>>) attributes {dimension_semantics = [#tpu.dimension_semantics<arbitrary>], iteration_bounds = array<i64: 1>, scalar_prefetch = 0 : i64, scratch_operands = 0 : i64, tpu.core_type = #tpu.core_type<tc>, window_params = [{pipeline_mode = #tpu.pipeline_mode<synchronous>, transform_indices = @transform_0, window_bounds = array<i64: 8, 128>}, {pipeline_mode = #tpu.pipeline_mode<synchronous>, transform_indices = @transform_1, window_bounds = array<i64: 8, 128>}, {pipeline_mode = #tpu.pipeline_mode<synchronous>, transform_indices = @transform_2, window_bounds = array<i64: 8, 128>}]} {
    %c0 = arith.constant 0 : index
    %c0_0 = arith.constant 0 : index
    %0 = vector.load %arg1[%c0, %c0_0] : memref<8x128xf32, #tpu.memory_space<vmem>>, vector<8x128xf32>
    %c0_1 = arith.constant 0 : index
    %c0_2 = arith.constant 0 : index
    %1 = vector.load %arg2[%c0_1, %c0_2] : memref<8x128xf32, #tpu.memory_space<vmem>>, vector<8x128xf32>
    %2 = arith.addf %0, %1 : vector<8x128xf32>
    %c0_3 = arith.constant 0 : index
    %c0_4 = arith.constant 0 : index
    %3 = vector.load %arg3[%c0_3, %c0_4] : memref<8x128xf32, #tpu.memory_space<vmem>>, vector<8x128xf32>
    tpu.vector_store %arg3[%c0_3, %c0_4], %2 {strides = array<i32>} : memref<8x128xf32, #tpu.memory_space<vmem>>, vector<8x128xf32>,
    return
  }
  func.func @transform_0(%arg0: i32) -> (i32, i32) {
    %c0_i32 = arith.constant 0 : i32
    %c0_i32_0 = arith.constant 0 : i32
    %c0_i32_1 = arith.constant 0 : i32
    return %c0_i32, %c0_i32_0 : i32, i32
  }
  func.func @transform_1(%arg0: i32) -> (i32, i32) {
    %c0_i32 = arith.constant 0 : i32
    %c0_i32_0 = arith.constant 0 : i32
    %c0_i32_1 = arith.constant 0 : i32
    return %c0_i32, %c0_i32_0 : i32, i32
  }
  func.func @transform_2(%arg0: i32) -> (i32, i32) {
    %c0_i32 = arith.constant 0 : i32
    %c0_i32_0 = arith.constant 0 : i32
    %c0_i32_1 = arith.constant 0 : i32
    return %c0_i32, %c0_i32_0 : i32, i32
  }
}

module attributes {stable_mosaic.version = 11 : i64} {
  func.func @kernel(%arg0: i32, %arg1: memref<16x128xbf16, #tpu.memory_space<vmem>>, %arg2: memref<128x128xbf16, #tpu.memory_space<vmem>>, %arg3: memref<4x128xf32, #tpu.memory_space<vmem>>, %arg4: memref<16x128xf32, #tpu.memory_space<vmem>>, %arg5: memref<16x128xf32, #tpu.memory_space<vmem>>) attributes {dimension_semantics = [#tpu.dimension_semantics<parallel>], iteration_bounds = array<i64: 1>, scalar_prefetch = 0 : i64, scratch_operands = 0 : i64, tpu.core_type = #tpu.core_type<tc>, window_params = [{transform_indices = @transform_0, window_bounds = array<i64: 16, 128>}, {pipeline_mode = #tpu.pipeline_mode<synchronous>, transform_indices = @transform_1, window_bounds = array<i64: 128, 128>}, {pipeline_mode = #tpu.pipeline_mode<synchronous>, transform_indices = @transform_2, window_bounds = array<i64: 4, 128>}, {transform_indices = @transform_3, window_bounds = array<i64: 16, 128>}, {transform_indices = @transform_4, window_bounds = array<i64: 16, 128>}]} {
    %c0 = arith.constant 0 : index
    %c0_0 = arith.constant 0 : index
    %0 = vector.load %arg1[%c0, %c0_0] : memref<16x128xbf16, #tpu.memory_space<vmem>>, vector<16x128xbf16>
    %c0_1 = arith.constant 0 : index
    %c0_2 = arith.constant 0 : index
    %1 = vector.load %arg2[%c0_1, %c0_2] : memref<128x128xbf16, #tpu.memory_space<vmem>>, vector<128x128xbf16>
    %cst = arith.constant dense<0.000000e+00> : vector<16x128xf32>
    %2 = tpu.matmul %0, %1, %cst {dimension_numbers = #tpu.dot_dimension_numbers<[1], [0], [0], [1], [0, 0, 1, 1], [], []>} : vector<16x128xbf16>, vector<128x128xbf16>, vector<16x128xf32> -> vector<16x128xf32>
    %c0_3 = arith.constant 0 : index
    %c0_4 = arith.constant 0 : index
    %3 = vector.load %arg3[%c0_3, %c0_4] : memref<4x128xf32, #tpu.memory_space<vmem>>, vector<4x128xf32>
    %4 = vector.extract_strided_slice %3 {offsets = [0, 0], sizes = [1, 128], strides = [1, 1]} : vector<4x128xf32> to vector<1x128xf32>
    %5 = vector.extract_strided_slice %3 {offsets = [1, 0], sizes = [1, 128], strides = [1, 1]} : vector<4x128xf32> to vector<1x128xf32>
    %6 = vector.extract_strided_slice %3 {offsets = [2, 0], sizes = [1, 128], strides = [1, 1]} : vector<4x128xf32> to vector<1x128xf32>
    %7 = vector.extract_strided_slice %3 {offsets = [3, 0], sizes = [1, 128], strides = [1, 1]} : vector<4x128xf32> to vector<1x128xf32>
    %8 = vector.broadcast %4 : vector<1x128xf32> to vector<16x128xf32>
    %9 = arith.addf %2, %8 : vector<16x128xf32>
    %c0_5 = arith.constant 0 : index
    %c0_6 = arith.constant 0 : index
    %10 = vector.load %arg4[%c0_5, %c0_6] : memref<16x128xf32, #tpu.memory_space<vmem>>, vector<16x128xf32>
    %11 = arith.addf %9, %10 : vector<16x128xf32>
    %cst_7 = arith.constant dense<0.000000e+00> : vector<16xf32>
    %12 = vector.multi_reduction <add>, %11, %cst_7 [1] : vector<16x128xf32> to vector<16xf32>
    %13 = vector.shape_cast %12 : vector<16xf32> to vector<16x1xf32>
    %cst_8 = arith.constant 3.125000e-02 : f32
    %14 = vector.broadcast %cst_8 : f32 to vector<16x1xf32>
    %15 = arith.mulf %13, %14 : vector<16x1xf32>
    %16 = vector.broadcast %15 : vector<16x1xf32> to vector<16x128xf32>
    %17 = arith.subf %11, %16 : vector<16x128xf32>
    %18 = vector.broadcast %7 : vector<1x128xf32> to vector<16x128xf32>
    %19 = arith.mulf %17, %18 : vector<16x128xf32>
    %20 = arith.mulf %19, %19 : vector<16x128xf32>
    %cst_9 = arith.constant dense<0.000000e+00> : vector<16xf32>
    %21 = vector.multi_reduction <add>, %20, %cst_9 [1] : vector<16x128xf32> to vector<16xf32>
    %22 = vector.shape_cast %21 : vector<16xf32> to vector<16x1xf32>
    %cst_10 = arith.constant 3.125000e-02 : f32
    %23 = vector.broadcast %cst_10 : f32 to vector<16x1xf32>
    %24 = arith.mulf %22, %23 : vector<16x1xf32>
    %cst_11 = arith.constant 9.99999996E-13 : f32
    %25 = vector.broadcast %cst_11 : f32 to vector<16x1xf32>
    %26 = arith.addf %24, %25 : vector<16x1xf32>
    %27 = math.rsqrt %26 : vector<16x1xf32>
    %28 = vector.broadcast %27 : vector<16x1xf32> to vector<16x128xf32>
    %29 = arith.mulf %19, %28 : vector<16x128xf32>
    %30 = vector.broadcast %5 : vector<1x128xf32> to vector<16x128xf32>
    %31 = arith.mulf %29, %30 : vector<16x128xf32>
    %32 = vector.broadcast %6 : vector<1x128xf32> to vector<16x128xf32>
    %33 = arith.addf %31, %32 : vector<16x128xf32>
    %c0_12 = arith.constant 0 : index
    %c0_13 = arith.constant 0 : index
    %34 = vector.load %arg5[%c0_12, %c0_13] : memref<16x128xf32, #tpu.memory_space<vmem>>, vector<16x128xf32>
    tpu.vector_store %arg5[%c0_12, %c0_13], %33 {strides = array<i32>} : memref<16x128xf32, #tpu.memory_space<vmem>>, vector<16x128xf32>,
    return
  }
  func.func @transform_0(%arg0: i32) -> (i32, i32) {
    %c0_i32 = arith.constant 0 : i32
    %c0_i32_0 = arith.constant 0 : i32
    return %arg0, %c0_i32 : i32, i32
  }
  func.func @transform_1(%arg0: i32) -> (i32, i32) {
    %c0_i32 = arith.constant 0 : i32
    %c0_i32_0 = arith.constant 0 : i32
    %c0_i32_1 = arith.constant 0 : i32
    return %c0_i32, %c0_i32_0 : i32, i32
  }
  func.func @transform_2(%arg0: i32) -> (i32, i32) {
    %c0_i32 = arith.constant 0 : i32
    %c0_i32_0 = arith.constant 0 : i32
    %c0_i32_1 = arith.constant 0 : i32
    return %c0_i32, %c0_i32_0 : i32, i32
  }
  func.func @transform_3(%arg0: i32) -> (i32, i32) {
    %c0_i32 = arith.constant 0 : i32
    %c0_i32_0 = arith.constant 0 : i32
    return %arg0, %c0_i32 : i32, i32
  }
  func.func @transform_4(%arg0: i32) -> (i32, i32) {
    %c0_i32 = arith.constant 0 : i32
    %c0_i32_0 = arith.constant 0 : i32
    return %arg0, %c0_i32 : i32, i32
  }
}

</mosaic_0001>

<llo_original>
// kernel: tpu_custom_call.1
$region0: #{tpu_custom_call.1}
  #allocation0 [shape = 'u32[]', space=smem, size = 0x4, offset = 0x4, fixed_abs, tag = 'smem constant byte address 0x4 - core index']
  #allocation1 [shape = 'u32[72,128]{1,0:T(1,128)}', space=vmem, size = 0x9000, scoped, tag = 'internal scratch']
  %s0 = inlined_call_operand.hbm [shape: f32[8,128], index: 0, kind: input, shape index: {}]
  %s1 = inlined_call_operand.hbm [shape: f32[8,128], index: 1, kind: input, shape index: {}]
  %s2 = inlined_call_operand.hbm [shape: f32[8,128], index: 2, kind: output, shape index: {}]
  %s3 = sld [smem:[#allocation0]]
  $region26: #{tpu_custom_call.1} parent=0
    _
  %s5 = ssub.s32 1, %s3
  %s6 = scalar_select 0, %s5, %s3
  $region1: #{tpu_custom_call.1} parent=0
    #allocation2 [shape = 'u8[4096]{0}', space=vmem, size = 0x1000, scoped, tag = 'input window, operand 0, single buffered']
    #allocation3 [shape = 's32[1]{0}', space=sflag, size = 0x4, scoped, tag = 'scoped memory for tpu_custom_call.1']
    #allocation4 [shape = 's32[1]{0}', space=sflag, size = 0x4, scoped, tag = 'scoped memory for tpu_custom_call.1']
    #allocation5 [shape = 'u8[4096]{0}', space=vmem, size = 0x1000, scoped, tag = 'input window, operand 1, single buffered']
    #allocation6 [shape = 's32[1]{0}', space=sflag, size = 0x4, scoped, tag = 'scoped memory for tpu_custom_call.1']
    #allocation7 [shape = 'u8[4096]{0}', space=vmem, size = 0x1000, scoped, tag = 'output window, operand 0, single buffered']
    %7 = vsyncpa [#allocation3], 0
    %8 = vsyncpa [#allocation6], 0
    %9 = vsyncpa [#allocation4], 0
    // Predicated region
    $region2: #{tpu_custom_call.1} parent=1 // pred_check
      _
    $region3: #{tpu_custom_call.1} parent=1 // pred_check_branch
      %11 = sbr.rel (0) target = $region5
    $region4: #{tpu_custom_call.1} parent=1 // pred_region
      %13 = vsyncadd [#allocation3], 0
      %s15 = sshll.u32 %s0, 4
      %s16 = int_to_ptr.hbm [resolvable:$true] %s15
      %s17 = sshll.u32 [#allocation2], 4
      %s18 = int_to_ptr.vmem [resolvable:$true] %s17
      %20 = dma.hbm_to_vmem [thread:$0]  %s16, 128, %s18, [#allocation3]
    $region5: #{tpu_custom_call.1} parent=1 // pred_fallthru
      _
    // Predicated region
    $region6: #{tpu_custom_call.1} parent=1 // pred_check
      _
    $region7: #{tpu_custom_call.1} parent=1 // pred_check_branch
      %22 = sbr.rel (0) target = $region9
    $region8: #{tpu_custom_call.1} parent=1 // pred_region
      %24 = vsyncadd [#allocation6], 0
      %s26 = sshll.u32 %s1, 4
      %s27 = int_to_ptr.hbm [resolvable:$true] %s26
      %s28 = sshll.u32 [#allocation5], 4
      %s29 = int_to_ptr.vmem [resolvable:$true] %s28
      %31 = dma.hbm_to_vmem [thread:$0]  %s27, 128, %s29, [#allocation6]
    $region9: #{tpu_custom_call.1} parent=1 // pred_fallthru
      _
    // Predicated region
    $region10: #{tpu_custom_call.1} parent=1 // pred_check
      _
    $region11: #{tpu_custom_call.1} parent=1 // pred_check_branch
      %33 = sbr.rel (0) target = $region13
    $region12: #{tpu_custom_call.1} parent=1 // pred_region
      %35 = dma.done [#allocation3], 128
    $region13: #{tpu_custom_call.1} parent=1 // pred_fallthru
      _
    // Predicated region
    $region14: #{tpu_custom_call.1} parent=1 // pred_check
      _
    $region15: #{tpu_custom_call.1} parent=1 // pred_check_branch
      %37 = sbr.rel (0) target = $region17
    $region16: #{tpu_custom_call.1} parent=1 // pred_region
      %39 = dma.done [#allocation6], 128
    $region17: #{tpu_custom_call.1} parent=1 // pred_fallthru
      _
    %v40 = vld [vmem:[#allocation2] sm:$0xff]
    %v41 = vld [vmem:[#allocation5] sm:$0xff]
    %v42 = vadd.f32 %v40, %v41
    %43 = vst [vmem:[#allocation7] sm:$0xff] %v42
    // Predicated region
    $region18: #{tpu_custom_call.1} parent=1 // pred_check
      _
    $region19: #{tpu_custom_call.1} parent=1 // pred_check_branch
      %45 = sbr.rel (0) target = $region21
    $region20: #{tpu_custom_call.1} parent=1 // pred_region
      %47 = vsyncadd [#allocation4], 0
      %s49 = sshll.u32 [#allocation7], 4
      %s50 = int_to_ptr.vmem [resolvable:$true] %s49
      %s51 = sshll.u32 %s2, 4
      %s52 = int_to_ptr.hbm [resolvable:$true] %s51
      %54 = dma.vmem_to_hbm [thread:$0]  %s50, 128, %s52, [#allocation4]
    $region21: #{tpu_custom_call.1} parent=1 // pred_fallthru
      _
    // Predicated region
    $region22: #{tpu_custom_call.1} parent=1 // pred_check
      _
    $region23: #{tpu_custom_call.1} parent=1 // pred_check_branch
      %56 = sbr.rel (0) target = $region25
    $region24: #{tpu_custom_call.1} parent=1 // pred_region
      %58 = dma.done [#allocation4], 128
    $region25: #{tpu_custom_call.1} parent=1 // pred_fallthru
      _
    %59 = vsyncpa [#allocation3], 1
    %60 = vsyncpa [#allocation6], 1
    %61 = vsyncpa [#allocation4], 1

// kernel: _forward_impl.1
$region0: #{_forward_impl.1}
  #allocation0 [shape = 'u32[]', space=smem, size = 0x4, offset = 0x4, fixed_abs, tag = 'smem constant byte address 0x4 - core index']
  #allocation1 [shape = 'u32[72,128]{1,0:T(1,128)}', space=vmem, size = 0x9000, scoped, tag = 'internal scratch']
  %s0 = inlined_call_operand.vmem [shape: bf16[16,128], index: 0, kind: input, shape index: {}]
  %s1 = inlined_call_operand.hbm [shape: bf16[128,128], index: 1, kind: input, shape index: {}]
  %s2 = inlined_call_operand.vmem [shape: f32[4,128], index: 2, kind: input, shape index: {}]
  %s3 = inlined_call_operand.vmem [shape: f32[16,128], index: 3, kind: input, shape index: {}]
  %s4 = inlined_call_operand.hbm [shape: f32[16,128], index: 4, kind: output, shape index: {}]
  %s5 = sld [smem:[#allocation0]]
  $region30: #{_forward_impl.1} parent=0
    _
  %s7 = ssub.s32 1, %s5
  %s8 = scalar_select 0, %s7, %s5
  $region1: #{_forward_impl.1} parent=0
    #allocation2 [shape = 'u8[32768]{0}', space=vmem, size = 0x8000, scoped, tag = 'input window, operand 1, single buffered']
    #allocation3 [shape = 's32[1]{0}', space=sflag, size = 0x4, scoped, tag = 'scoped memory for _forward_impl.1']
    #allocation4 [shape = 's32[1]{0}', space=sflag, size = 0x4, scoped, tag = 'scoped memory for _forward_impl.1']
    #allocation5 [shape = 'u8[8192]{0}', space=vmem, size = 0x2000, scoped, tag = 'output window, operand 0, single buffered']
    %9 = vsyncpa [#allocation3], 0
    %10 = vsyncpa [#allocation4], 0
    // Predicated region
    $region2: #{_forward_impl.1} parent=1 // pred_check
      _
    $region3: #{_forward_impl.1} parent=1 // pred_check_branch
      %12 = sbr.rel (0) target = $region5
    $region4: #{_forward_impl.1} parent=1 // pred_region
      _
    $region5: #{_forward_impl.1} parent=1 // pred_fallthru
      _
    // Predicated region
    $region6: #{_forward_impl.1} parent=1 // pred_check
      _
    $region7: #{_forward_impl.1} parent=1 // pred_check_branch
      %14 = sbr.rel (0) target = $region9
    $region8: #{_forward_impl.1} parent=1 // pred_region
      %16 = vsyncadd [#allocation3], 0
      %s17 = sshll.u32 %s1, 4
      %s18 = int_to_ptr.hbm [resolvable:$true] %s17
      %s19 = sshll.u32 [#allocation2], 4
      %s20 = int_to_ptr.vmem [resolvable:$true] %s19
      %25 = dma.hbm_to_vmem [thread:$0]  %s18, 1024, %s20, [#allocation3], 64, 64, 4
    $region9: #{_forward_impl.1} parent=1 // pred_fallthru
      _
    // Predicated region
    $region10: #{_forward_impl.1} parent=1 // pred_check
      _
    $region11: #{_forward_impl.1} parent=1 // pred_check_branch
      %27 = sbr.rel (0) target = $region13
    $region12: #{_forward_impl.1} parent=1 // pred_region
      _
    $region13: #{_forward_impl.1} parent=1 // pred_fallthru
      _
    // Predicated region
    $region14: #{_forward_impl.1} parent=1 // pred_check
      _
    $region15: #{_forward_impl.1} parent=1 // pred_check_branch
      %29 = sbr.rel (0) target = $region17
    $region16: #{_forward_impl.1} parent=1 // pred_region
      _
    $region17: #{_forward_impl.1} parent=1 // pred_fallthru
      _
    // Predicated region
    $region18: #{_forward_impl.1} parent=1 // pred_check
      _
    $region19: #{_forward_impl.1} parent=1 // pred_check_branch
      %31 = sbr.rel (0) target = $region21
    $region20: #{_forward_impl.1} parent=1 // pred_region
      %33 = dma.done [#allocation3], 1024
    $region21: #{_forward_impl.1} parent=1 // pred_fallthru
      _
    %v34 = vld [vmem:[%s0] sm:$0xf]
    %v35 = vld [vmem:[%s0 + $0x4] sm:$0xf]
    %v36 = vld [vmem:[#allocation2] sm:$0xf]
    %v37 = vld [vmem:[#allocation2 + $0x4] sm:$0xf]
    %v38 = vld [vmem:[#allocation2 + $0x8] sm:$0xf]
    %v39 = vld [vmem:[#allocation2 + $0xc] sm:$0xf]
    %v40 = vld [vmem:[#allocation2 + $0x10] sm:$0xf]
    %v41 = vld [vmem:[#allocation2 + $0x14] sm:$0xf]
    %v42 = vld [vmem:[#allocation2 + $0x18] sm:$0xf]
    %v43 = vld [vmem:[#allocation2 + $0x1c] sm:$0xf]
    %v44 = vld [vmem:[#allocation2 + $0x20] sm:$0xf]
    %v45 = vld [vmem:[#allocation2 + $0x24] sm:$0xf]
    %v46 = vld [vmem:[#allocation2 + $0x28] sm:$0xf]
    %v47 = vld [vmem:[#allocation2 + $0x2c] sm:$0xf]
    %v48 = vld [vmem:[#allocation2 + $0x30] sm:$0xf]
    %v49 = vld [vmem:[#allocation2 + $0x34] sm:$0xf]
    %v50 = vld [vmem:[#allocation2 + $0x38] sm:$0xf]
    %v51 = vld [vmem:[#allocation2 + $0x3c] sm:$0xf]
    %v52 = vld [vmem:[%s2] sm:$0xf]
    %v53 = vperm.slane %v52, 0
    %v56 = vunpack.c.l.b16 %v34
    %v57 = vunpack.c.l.b16 %v35
    %v58 = vpack.c.b16 %v57, %v56
    %v76 = vunpack.c.l.b16 %v36
    %v77 = vunpack.c.l.b16 %v37
    %v78 = vunpack.c.l.b16 %v38
    %v79 = vunpack.c.l.b16 %v39
    %v80 = vunpack.c.l.b16 %v40
    %v81 = vunpack.c.l.b16 %v41
    %v82 = vunpack.c.l.b16 %v42
    %v83 = vunpack.c.l.b16 %v43
    %v84 = vunpack.c.l.b16 %v44
    %v85 = vunpack.c.l.b16 %v45
    %v86 = vunpack.c.l.b16 %v46
    %v87 = vunpack.c.l.b16 %v47
    %v88 = vunpack.c.l.b16 %v48
    %v89 = vunpack.c.l.b16 %v49
    %v90 = vunpack.c.l.b16 %v50
    %v91 = vunpack.c.l.b16 %v51
    %v92 = vpack.c.b16 %v77, %v76
    %v93 = vpack.c.b16 %v79, %v78
    %v94 = vpack.c.b16 %v81, %v80
    %v95 = vpack.c.b16 %v83, %v82
    %v96 = vpack.c.b16 %v85, %v84
    %v97 = vpack.c.b16 %v87, %v86
    %v98 = vpack.c.b16 %v89, %v88
    %v99 = vpack.c.b16 %v91, %v90
    %108 = vmatpush.bf16.msra.mxu0 %v99
    %109 = vmatpush.bf16.msra.mxu0 %v98
    %110 = vmatpush.bf16.msra.mxu0 %v97
    %111 = vmatpush.bf16.msra.mxu0 %v96
    %112 = vmatpush.bf16.msra.mxu0 %v95
    %113 = vmatpush.bf16.msra.mxu0 %v94
    %114 = vmatpush.bf16.msra.mxu0 %v93
    %115 = vmatpush.bf16.msra.mxu0 %v92
    %116 = vmatmul.bf16.gmra.mxu0 %v58
    %v117 = vpop.f32.mrf.mxu0
    %v118 = vadd.f32 %v53, %v117
    %v119 = vpop.f32.mrf.mxu0
    %v120 = vadd.f32 %v53, %v119
    %121 = vdwg.mxu0
    %v122 = vld [vmem:[%s3] sm:$0xff]
    %v123 = vld [vmem:[%s3 + $0x8] sm:$0xff]
    %v124 = vadd.f32 %v118, %v122
    %v125 = vadd.f32 %v120, %v123
    %126 = vadd.xlane.f32.xlu0 %v124
    %v127 = vpop.xlane.xlu0 %126
    %128 = vadd.xlane.f32.xlu0 %v125
    %v129 = vpop.xlane.xlu0 %128
    %v130 = vmul.f32 %v127, 0.03125
    %v131 = vmul.f32 %v129, 0.03125
    %v132 = vsub.f32 %v124, %v130
    %v133 = vsub.f32 %v125, %v131
    %v134 = vperm.slane %v52, 3
    %v135 = vmul.f32 %v132, %v134
    %v136 = vmul.f32 %v133, %v134
    %v137 = vmul.f32 %v135, %v135
    %v138 = vmul.f32 %v136, %v136
    %139 = vadd.xlane.f32.xlu0 %v137
    %v140 = vpop.xlane.xlu0 %139
    %141 = vadd.xlane.f32.xlu0 %v138
    %v142 = vpop.xlane.xlu0 %141
    %v143 = vmul.f32 %v140, 0.03125
    %v144 = vmul.f32 %v142, 0.03125
    %v145 = vadd.f32 %v143, 1e-12
    %v146 = vadd.f32 %v144, 1e-12
    %v147 = vrsqrt.pop %v145
    %v148 = vmul.f32 %v147, %v145
    %v149 = vmul.f32 %v148, %v147
    %v150 = vmul.f32 0.5, %v149
    %v151 = vsub.f32 1.5, %v150
    %v152 = vmul.f32 %v147, %v151
    %vm153 = vweird.f32 %v145
    %vm154 = vweird.f32 %v147
    %vm155 = vmor %vm153, %vm154
    %v156 = vsel %vm155, %v147, %v152
    %v157 = vrsqrt.pop %v146
    %v158 = vmul.f32 %v157, %v146
    %v159 = vmul.f32 %v158, %v157
    %v160 = vmul.f32 0.5, %v159
    %v161 = vsub.f32 1.5, %v160
    %v162 = vmul.f32 %v157, %v161
    %vm163 = vweird.f32 %v146
    %vm164 = vweird.f32 %v157
    %vm165 = vmor %vm163, %vm164
    %v166 = vsel %vm165, %v157, %v162
    %v167 = vmul.f32 %v135, %v156
    %v168 = vmul.f32 %v136, %v166
    %v169 = vperm.slane %v52, 1
    %v170 = vmul.f32 %v167, %v169
    %v171 = vmul.f32 %v168, %v169
    %v172 = vperm.slane %v52, 2
    %v173 = vadd.f32 %v170, %v172
    %v174 = vadd.f32 %v171, %v172
    %175 = vst [vmem:[#allocation5] sm:$0xff] %v173
    %176 = vst [vmem:[#allocation5 + $0x8] sm:$0xff] %v174
    // Predicated region
    $region22: #{_forward_impl.1} parent=1 // pred_check
      _
    $region23: #{_forward_impl.1} parent=1 // pred_check_branch
      %178 = sbr.rel (0) target = $region25
    $region24: #{_forward_impl.1} parent=1 // pred_region
      %180 = vsyncadd [#allocation4], 0
      %s181 = sshll.u32 [#allocation5], 4
      %s182 = int_to_ptr.vmem [resolvable:$true] %s181
      %s183 = sshll.u32 %s4, 4
      %s184 = int_to_ptr.hbm [resolvable:$true] %s183
      %189 = dma.vmem_to_hbm [thread:$0]  %s182, 256, %s184, [#allocation4], 128, 128, 8
    $region25: #{_forward_impl.1} parent=1 // pred_fallthru
      _
    // Predicated region
    $region26: #{_forward_impl.1} parent=1 // pred_check
      _
    $region27: #{_forward_impl.1} parent=1 // pred_check_branch
      %191 = sbr.rel (0) target = $region29
    $region28: #{_forward_impl.1} parent=1 // pred_region
      %193 = dma.done [#allocation4], 256
    $region29: #{_forward_impl.1} parent=1 // pred_fallthru
      _
    %194 = vsyncpa [#allocation3], 1
    %195 = vsyncpa [#allocation4], 1

</llo_original>
